<compile_context>
chip_gen: v5e
topology: v5e:2x2
jax: 0.10.0
libtpu: 0.0.40
codegen_flags: <defaults>
</compile_context>

<pallas_src>
import math
import jax
import jax.numpy as jnp
from jax.experimental import pallas as pl
from jax.experimental.pallas import tpu as pltpu

_LANE = 128


def _round_up(x, m):
    return ((x + m - 1) // m) * m


def _prep(a, rows, cols, dtype):
    """Cast first (no-op if same dtype), then zero-pad (no-op if already sized)."""
    if a.dtype != dtype:
        a = a.astype(dtype)
    r, c = a.shape
    if r != rows or c != cols:
        a = jnp.pad(a, ((0, rows - r), (0, cols - c)))
    return a


def _pick_tile(dim, cap):
    """Largest multiple of 128 that divides `dim` (a 128-multiple) and is <= cap."""
    cap = max(_LANE, min(dim, cap))
    t = (cap // _LANE) * _LANE
    while dim % t != 0:
        t -= _LANE
    return t


def _footprint_bytes(tm, tn, tk, a_bytes, b_bytes, o_bytes, with_acc):
    """Double-buffered pipelined working set for one tiled-matmul pallas_call."""
    f = 2 * tm * tk * a_bytes + 2 * tk * tn * b_bytes + 2 * tm * tn * o_bytes
    f += 2 * tn * 4  # bias stream (worst case)
    if with_acc:
        f += tm * tn * 4
    return f


# ---------------- kernel bodies ----------------

def _mm_single_bias(a_ref, b_ref, bias_ref, o_ref):
    acc = jnp.dot(a_ref[...], b_ref[...], preferred_element_type=jnp.float32)
    o_ref[...] = (acc + bias_ref[...]).astype(o_ref.dtype)


def _mm_single(a_ref, b_ref, o_ref):
    o_ref[...] = jnp.dot(
        a_ref[...], b_ref[...], preferred_element_type=jnp.float32
    ).astype(o_ref.dtype)


def _mm_acc_bias(a_ref, b_ref, bias_ref, o_ref, acc_ref):
    k = pl.program_id(2)

    @pl.when(k == 0)
    def _():
        acc_ref[...] = jnp.zeros_like(acc_ref)

    acc_ref[...] += jnp.dot(a_ref[...], b_ref[...], preferred_element_type=jnp.float32)

    @pl.when(k == pl.num_programs(2) - 1)
    def _():
        o_ref[...] = (acc_ref[...] + bias_ref[...]).astype(o_ref.dtype)


def _mm_acc(a_ref, b_ref, o_ref, acc_ref):
    k = pl.program_id(2)

    @pl.when(k == 0)
    def _():
        acc_ref[...] = jnp.zeros_like(acc_ref)

    acc_ref[...] += jnp.dot(a_ref[...], b_ref[...], preferred_element_type=jnp.float32)

    @pl.when(k == pl.num_programs(2) - 1)
    def _():
        o_ref[...] = acc_ref[...].astype(o_ref.dtype)


# ---------------- tiled matmul wrapper ----------------

def _tiled_matmul(a, b, bias_row, out_dtype, tm, tn, tk):
    """C = A @ B (+ bias_row). Shapes already padded to tile multiples."""
    M, K = a.shape
    Kb, N = b.shape
    assert K == Kb
    assert M % tm == 0 and N % tn == 0 and K % tk == 0
    nm, nn, nk = M // tm, N // tn, K // tk
    single = nk == 1  # full K resident -> no accumulation scratch, no pl.when

    a_spec = pl.BlockSpec((tm, tk), lambda i, j, k: (i, k))
    b_spec = pl.BlockSpec((tk, tn), lambda i, j, k: (k, j))
    o_spec = pl.BlockSpec((tm, tn), lambda i, j, k: (i, j))

    if bias_row is not None:
        bias_spec = pl.BlockSpec((1, tn), lambda i, j, k: (0, j))
        in_specs = [a_spec, b_spec, bias_spec]
        args = (a, b, bias_row)
        kernel = _mm_single_bias if single else _mm_acc_bias
    else:
        in_specs = [a_spec, b_spec]
        args = (a, b)
        kernel = _mm_single if single else _mm_acc

    scratch = [] if single else [pltpu.VMEM((tm, tn), jnp.float32)]

    return pl.pallas_call(
        kernel,
        out_shape=jax.ShapeDtypeStruct((M, N), out_dtype),
        grid_spec=pltpu.PrefetchScalarGridSpec(
            num_scalar_prefetch=0,
            grid=(nm, nn, nk),  # reduction axis last
            in_specs=in_specs,
            out_specs=o_spec,
            scratch_shapes=scratch,
        ),
        compiler_params=pltpu.CompilerParams(
            dimension_semantics=("parallel", "parallel", "arbitrary"),
            vmem_limit_bytes=48 * 1024 * 1024,
        ),
    )(*args)


# ---------------- GCN forward ----------------

def graph_convolution(
    x,
    adj,
    weight,
    bias=None,
    *,
    compute_dtype=None,
    tile_m=512,
    tile_n=1024,
    tile_k=512,
    vmem_budget_bytes=24 * 1024 * 1024,
):
    """GCN forward: adj @ (x @ weight) + bias.

    x: [N, F_in], adj: [N, N] dense, weight: [F_in, F_out], bias: [F_out] or None.
    compute_dtype applies to x / weight / support only; adj keeps its stored dtype
    (a wrapper downcast of the N^2 adj stream is a net HBM loss for one forward).
    Accumulation is always f32.
    """
    N, F_in = x.shape
    F_in2, F_out = weight.shape
    assert F_in2 == F_in and adj.shape == (N, N)

    out_dtype = x.dtype
    cd = jnp.dtype(compute_dtype) if compute_dtype is not None else jnp.dtype(x.dtype)

    # Pad only to 128 multiples (lane-dense, (8,128)-legal) — not to tile multiples.
    Np = _round_up(N, _LANE)
    Kp = _round_up(F_in, _LANE)
    Fp = _round_up(F_out, _LANE)

    x_p = _prep(x, Np, Kp, cd)
    w_p = _prep(weight, Kp, Fp, cd)
    adj_p = _prep(adj, Np, Np, adj.dtype)  # no dtype change

    bias_row = None
    if bias is not None:
        bias_row = jnp.pad(bias.astype(jnp.float32), (0, Fp - F_out)).reshape(1, Fp)

    cd_b = jnp.dtype(cd).itemsize
    adj_b = jnp.dtype(adj_p.dtype).itemsize
    out_b = jnp.dtype(out_dtype).itemsize

    # Row tile: cap at Np/2 when possible so the "parallel" i axis has >=2 tiles.
    tm_cap = min(tile_m, Np // 2) if Np >= 2 * _LANE else tile_m
    tm = _pick_tile(Np, tm_cap)

    # Output-feature tile: whole padded width when it fits -> adj read exactly once.
    tn = Fp if Fp <= max(tile_n, _LANE) else _pick_tile(Fp, tile_n)

    # ---- Stage 1: support = x @ weight (bias-free; computed once) ----
    if _footprint_bytes(tm, tn, Kp, cd_b, cd_b, cd_b, False) <= vmem_budget_bytes:
        tk1 = Kp  # weight block resident, single K step, no acc scratch
    else:
        tk1 = _pick_tile(Kp, tile_k)
    support = _tiled_matmul(x_p, w_p, None, cd, tm, tn, tk1)

    # ---- Stage 2: out = adj @ support (+ bias) ----
    if _footprint_bytes(tm, tn, Np, adj_b, cd_b, out_b, False) <= vmem_budget_bytes:
        tk2 = Np  # support fully resident, single K step, one pass over adj
    else:
        tk2 = _pick_tile(Np, tile_k)
    out_p = _tiled_matmul(adj_p, support, bias_row, out_dtype, tm, tn, tk2)

    return out_p[:N, :F_out]


if __name__ == "__main__":
    key = jax.random.PRNGKey(0)
    k_x, k_adj, k_w, k_b = jax.random.split(key, 4)

    # ---- Check 1: module-scale shapes (N=8, F_in=32, F_out=32), f32 path ----
    N, F_in, F_out = 8, 32, 32
    stdv = 1.0 / math.sqrt(F_out)  # mirrors reset_parameters()
    weight = jax.random.uniform(k_w, (F_in, F_out), jnp.float32, -stdv, stdv)
    bias = jax.random.uniform(k_b, (F_out,), jnp.float32, -stdv, stdv)
    x = jax.random.normal(k_x, (N, F_in), jnp.float32)
    adj_raw = jax.random.uniform(k_adj, (N, N), jnp.float32)
    adj = adj_raw / jnp.sum(adj_raw, axis=1, keepdims=True)  # row-normalized

    out = graph_convolution(x, adj, weight, bias)
    jax.block_until_ready(out)
    ref = adj @ (x @ weight) + bias
    assert out.shape == (N, F_out)
    assert jnp.allclose(out, ref, atol=2e-5, rtol=2e-5), "f32 mismatch vs reference"

    # bf16 x/weight/support (f32 adj, f32 accumulation) path.
    out_bf16 = graph_convolution(x, adj, weight, bias, compute_dtype=jnp.bfloat16)
    jax.block_until_ready(out_bf16)
    assert jnp.allclose(out_bf16, ref, atol=5e-2, rtol=5e-2), "bf16 mismatch vs reference"

    # ---- Check 2: force a real multi-tile grid with K accumulation ----
    N2, F_in2, F_out2 = 256, 256, 128
    k_x2, k_adj2, k_w2, k_b2 = jax.random.split(jax.random.PRNGKey(1), 4)
    stdv2 = 1.0 / math.sqrt(F_out2)
    w2 = jax.random.uniform(k_w2, (F_in2, F_out2), jnp.float32, -stdv2, stdv2)
    b2 = jax.random.uniform(k_b2, (F_out2,), jnp.float32, -stdv2, stdv2)
    x2 = jax.random.normal(k_x2, (N2, F_in2), jnp.float32)
    adj2_raw = jax.random.uniform(k_adj2, (N2, N2), jnp.float32)
    adj2 = adj2_raw / jnp.sum(adj2_raw, axis=1, keepdims=True)

    # Tiny VMEM budget disables the resident-K fast path -> exercises the
    # accumulator kernel (grid (2,1,2)) as well as multi-row tiling.
    out2 = graph_convolution(
        x2, adj2, w2, b2, tile_m=128, tile_n=128, tile_k=128,
        vmem_budget_bytes=512 * 1024,
    )
    jax.block_until_ready(out2)
    ref2 = adj2 @ (x2 @ w2) + b2
    assert jnp.allclose(out2, ref2, atol=2e-4, rtol=2e-4), "tiled mismatch vs reference"

    # bias=None path (matches register_parameter('bias', None) semantics).
    out_nb = graph_convolution(x, adj, weight, None)
    jax.block_until_ready(out_nb)
    assert jnp.allclose(out_nb, adj @ (x @ weight), atol=2e-5, rtol=2e-5)

    print("KERNEL_OK")
</pallas_src>

<mosaic_0001>
module attributes {stable_mosaic.version = 11 : i64} {
  func.func @_mm_single(%arg0: i32, %arg1: i32, %arg2: i32, %arg3: memref<128x128xf32, #tpu.memory_space<vmem>>, %arg4: memref<128x128xf32, #tpu.memory_space<vmem>>, %arg5: memref<128x128xf32, #tpu.memory_space<vmem>>) attributes {dimension_semantics = [#tpu.dimension_semantics<parallel>, #tpu.dimension_semantics<parallel>, #tpu.dimension_semantics<arbitrary>], iteration_bounds = array<i64: 1, 1, 1>, scalar_prefetch = 0 : i64, scratch_operands = 0 : i64, tpu.core_type = #tpu.core_type<tc>, window_params = [{transform_indices = @transform_0, window_bounds = array<i64: 128, 128>}, {transform_indices = @transform_1, window_bounds = array<i64: 128, 128>}, {transform_indices = @transform_2, window_bounds = array<i64: 128, 128>}]} {
    %c0 = arith.constant 0 : index
    %c0_0 = arith.constant 0 : index
    %0 = vector.load %arg3[%c0, %c0_0] : memref<128x128xf32, #tpu.memory_space<vmem>>, vector<128x128xf32>
    %c0_1 = arith.constant 0 : index
    %c0_2 = arith.constant 0 : index
    %1 = vector.load %arg4[%c0_1, %c0_2] : memref<128x128xf32, #tpu.memory_space<vmem>>, vector<128x128xf32>
    %cst = arith.constant dense<0.000000e+00> : vector<128x128xf32>
    %2 = tpu.matmul %0, %1, %cst {dimension_numbers = #tpu.dot_dimension_numbers<[1], [0], [0], [1], [0, 0, 1, 1], [], []>} : vector<128x128xf32>, vector<128x128xf32>, vector<128x128xf32> -> vector<128x128xf32>
    %c0_3 = arith.constant 0 : index
    %c0_4 = arith.constant 0 : index
    %3 = vector.load %arg5[%c0_3, %c0_4] : memref<128x128xf32, #tpu.memory_space<vmem>>, vector<128x128xf32>
    tpu.vector_store %arg5[%c0_3, %c0_4], %2 {strides = array<i32>} : memref<128x128xf32, #tpu.memory_space<vmem>>, vector<128x128xf32>,
    return
  }
  func.func @transform_0(%arg0: i32, %arg1: i32, %arg2: i32) -> (i32, i32) {
    %c0_i32 = arith.constant 0 : i32
    return %arg0, %arg2 : i32, i32
  }
  func.func @transform_1(%arg0: i32, %arg1: i32, %arg2: i32) -> (i32, i32) {
    %c0_i32 = arith.constant 0 : i32
    return %arg2, %arg1 : i32, i32
  }
  func.func @transform_2(%arg0: i32, %arg1: i32, %arg2: i32) -> (i32, i32) {
    %c0_i32 = arith.constant 0 : i32
    return %arg0, %arg1 : i32, i32
  }
}

</mosaic_0001>

<llo_original>
// kernel: tpu_custom_call.1
$region0: #{tpu_custom_call.1}
  #allocation0 [shape = 'u32[]', space=smem, size = 0x4, offset = 0x4, fixed_abs, tag = 'smem constant byte address 0x4 - core index']
  #allocation1 [shape = 'u32[72,128]{1,0:T(1,128)}', space=vmem, size = 0x9000, scoped, tag = 'internal scratch']
  %s0 = inlined_call_operand.hbm [shape: f32[128,128], index: 0, kind: input, shape index: {}]
  %s1 = inlined_call_operand.hbm [shape: f32[128,128], index: 1, kind: input, shape index: {}]
  %s2 = inlined_call_operand.hbm [shape: f32[128,128], index: 2, kind: output, shape index: {}]
  %s3 = sld [smem:[#allocation0]]
  $region26: #{tpu_custom_call.1} parent=0
    _
  %s5 = ssub.s32 1, %s3
  %s6 = scalar_select 0, %s5, %s3
  $region1: #{tpu_custom_call.1} parent=0
    #allocation2 [shape = 'u8[65536]{0}', space=vmem, size = 0x10000, scoped, tag = 'input window, operand 0, single buffered']
    #allocation3 [shape = 's32[1]{0}', space=sflag, size = 0x4, scoped, tag = 'scoped memory for tpu_custom_call.1']
    #allocation4 [shape = 's32[1]{0}', space=sflag, size = 0x4, scoped, tag = 'scoped memory for tpu_custom_call.1']
    #allocation5 [shape = 'u8[65536]{0}', space=vmem, size = 0x10000, scoped, tag = 'input window, operand 1, single buffered']
    #allocation6 [shape = 's32[1]{0}', space=sflag, size = 0x4, scoped, tag = 'scoped memory for tpu_custom_call.1']
    #allocation7 [shape = 'u8[65536]{0}', space=vmem, size = 0x10000, scoped, tag = 'output window, operand 0, single buffered']
    %7 = vsyncpa [#allocation3], 0
    %8 = vsyncpa [#allocation6], 0
    %9 = vsyncpa [#allocation4], 0
    // Predicated region
    $region2: #{tpu_custom_call.1} parent=1 // pred_check
      _
    $region3: #{tpu_custom_call.1} parent=1 // pred_check_branch
      %11 = sbr.rel (0) target = $region5
    $region4: #{tpu_custom_call.1} parent=1 // pred_region
      %13 = vsyncadd [#allocation3], 0
      %s14 = sshll.u32 %s0, 4
      %s15 = int_to_ptr.hbm [resolvable:$true] %s14
      %s16 = sshll.u32 [#allocation2], 4
      %s17 = int_to_ptr.vmem [resolvable:$true] %s16
      %22 = dma.hbm_to_vmem [thread:$0]  %s15, 2048, %s17, [#allocation3], 128, 128, 8
    $region5: #{tpu_custom_call.1} parent=1 // pred_fallthru
      _
    // Predicated region
    $region6: #{tpu_custom_call.1} parent=1 // pred_check
      _
    $region7: #{tpu_custom_call.1} parent=1 // pred_check_branch
      %24 = sbr.rel (0) target = $region9
    $region8: #{tpu_custom_call.1} parent=1 // pred_region
      %26 = vsyncadd [#allocation6], 0
      %s27 = sshll.u32 %s1, 4
      %s28 = int_to_ptr.hbm [resolvable:$true] %s27
      %s29 = sshll.u32 [#allocation5], 4
      %s30 = int_to_ptr.vmem [resolvable:$true] %s29
      %35 = dma.hbm_to_vmem [thread:$0]  %s28, 2048, %s30, [#allocation6], 128, 128, 8
    $region9: #{tpu_custom_call.1} parent=1 // pred_fallthru
      _
    // Predicated region
    $region10: #{tpu_custom_call.1} parent=1 // pred_check
      _
    $region11: #{tpu_custom_call.1} parent=1 // pred_check_branch
      %37 = sbr.rel (0) target = $region13
    $region12: #{tpu_custom_call.1} parent=1 // pred_region
      %39 = dma.done [#allocation3], 2048
    $region13: #{tpu_custom_call.1} parent=1 // pred_fallthru
      _
    // Predicated region
    $region14: #{tpu_custom_call.1} parent=1 // pred_check
      _
    $region15: #{tpu_custom_call.1} parent=1 // pred_check_branch
      %41 = sbr.rel (0) target = $region17
    $region16: #{tpu_custom_call.1} parent=1 // pred_region
      %43 = dma.done [#allocation6], 2048
    $region17: #{tpu_custom_call.1} parent=1 // pred_fallthru
      _
    %v44 = vld [vmem:[#allocation2] sm:$0xff]
    %v45 = vld [vmem:[#allocation2 + $0x8] sm:$0xff]
    %v46 = vld [vmem:[#allocation2 + $0x10] sm:$0xff]
    %v47 = vld [vmem:[#allocation2 + $0x18] sm:$0xff]
    %v48 = vld [vmem:[#allocation2 + $0x20] sm:$0xff]
    %v49 = vld [vmem:[#allocation2 + $0x28] sm:$0xff]
    %v50 = vld [vmem:[#allocation2 + $0x30] sm:$0xff]
    %v51 = vld [vmem:[#allocation2 + $0x38] sm:$0xff]
    %v52 = vld [vmem:[#allocation2 + $0x40] sm:$0xff]
    %v53 = vld [vmem:[#allocation2 + $0x48] sm:$0xff]
    %v54 = vld [vmem:[#allocation2 + $0x50] sm:$0xff]
    %v55 = vld [vmem:[#allocation2 + $0x58] sm:$0xff]
    %v56 = vld [vmem:[#allocation2 + $0x60] sm:$0xff]
    %v57 = vld [vmem:[#allocation2 + $0x68] sm:$0xff]
    %v58 = vld [vmem:[#allocation2 + $0x70] sm:$0xff]
    %v59 = vld [vmem:[#allocation2 + $0x78] sm:$0xff]
    %v60 = vld [vmem:[#allocation5] sm:$0xff]
    %v61 = vld [vmem:[#allocation5 + $0x8] sm:$0xff]
    %v62 = vld [vmem:[#allocation5 + $0x10] sm:$0xff]
    %v63 = vld [vmem:[#allocation5 + $0x18] sm:$0xff]
    %v64 = vld [vmem:[#allocation5 + $0x20] sm:$0xff]
    %v65 = vld [vmem:[#allocation5 + $0x28] sm:$0xff]
    %v66 = vld [vmem:[#allocation5 + $0x30] sm:$0xff]
    %v67 = vld [vmem:[#allocation5 + $0x38] sm:$0xff]
    %v68 = vld [vmem:[#allocation5 + $0x40] sm:$0xff]
    %v69 = vld [vmem:[#allocation5 + $0x48] sm:$0xff]
    %v70 = vld [vmem:[#allocation5 + $0x50] sm:$0xff]
    %v71 = vld [vmem:[#allocation5 + $0x58] sm:$0xff]
    %v72 = vld [vmem:[#allocation5 + $0x60] sm:$0xff]
    %v73 = vld [vmem:[#allocation5 + $0x68] sm:$0xff]
    %v74 = vld [vmem:[#allocation5 + $0x70] sm:$0xff]
    %v75 = vld [vmem:[#allocation5 + $0x78] sm:$0xff]
    %76 = vmatpush.msra.mxu0 %v75
    %77 = vmatpush.msra.mxu0 %v74
    %78 = vmatpush.msra.mxu0 %v73
    %79 = vmatpush.msra.mxu0 %v72
    %80 = vmatpush.msra.mxu0 %v71
    %81 = vmatpush.msra.mxu0 %v70
    %82 = vmatpush.msra.mxu0 %v69
    %83 = vmatpush.msra.mxu0 %v68
    %84 = vmatpush.msra.mxu0 %v67
    %85 = vmatpush.msra.mxu0 %v66
    %86 = vmatpush.msra.mxu0 %v65
    %87 = vmatpush.msra.mxu0 %v64
    %88 = vmatpush.msra.mxu0 %v63
    %89 = vmatpush.msra.mxu0 %v62
    %90 = vmatpush.msra.mxu0 %v61
    %91 = vmatpush.msra.mxu0 %v60
    %92 = vmatmul.f32.gmra.mxu0 %v44
    %v93 = vpop.f32.mrf.mxu0
    %v94 = vadd.f32 0.0, %v93
    %95 = vmatmul.f32.gmra.mxu0 %v45
    %v96 = vpop.f32.mrf.mxu0
    %v97 = vadd.f32 0.0, %v96
    %98 = vmatmul.f32.gmra.mxu0 %v46
    %v99 = vpop.f32.mrf.mxu0
    %v100 = vadd.f32 0.0, %v99
    %101 = vmatmul.f32.gmra.mxu0 %v47
    %v102 = vpop.f32.mrf.mxu0
    %v103 = vadd.f32 0.0, %v102
    %104 = vmatmul.f32.gmra.mxu0 %v48
    %v105 = vpop.f32.mrf.mxu0
    %v106 = vadd.f32 0.0, %v105
    %107 = vmatmul.f32.gmra.mxu0 %v49
    %v108 = vpop.f32.mrf.mxu0
    %v109 = vadd.f32 0.0, %v108
    %110 = vmatmul.f32.gmra.mxu0 %v50
    %v111 = vpop.f32.mrf.mxu0
    %v112 = vadd.f32 0.0, %v111
    %113 = vmatmul.f32.gmra.mxu0 %v51
    %v114 = vpop.f32.mrf.mxu0
    %v115 = vadd.f32 0.0, %v114
    %116 = vmatmul.f32.gmra.mxu0 %v52
    %v117 = vpop.f32.mrf.mxu0
    %v118 = vadd.f32 0.0, %v117
    %119 = vmatmul.f32.gmra.mxu0 %v53
    %v120 = vpop.f32.mrf.mxu0
    %v121 = vadd.f32 0.0, %v120
    %122 = vmatmul.f32.gmra.mxu0 %v54
    %v123 = vpop.f32.mrf.mxu0
    %v124 = vadd.f32 0.0, %v123
    %125 = vmatmul.f32.gmra.mxu0 %v55
    %v126 = vpop.f32.mrf.mxu0
    %v127 = vadd.f32 0.0, %v126
    %128 = vmatmul.f32.gmra.mxu0 %v56
    %v129 = vpop.f32.mrf.mxu0
    %v130 = vadd.f32 0.0, %v129
    %131 = vmatmul.f32.gmra.mxu0 %v57
    %v132 = vpop.f32.mrf.mxu0
    %v133 = vadd.f32 0.0, %v132
    %134 = vmatmul.f32.gmra.mxu0 %v58
    %v135 = vpop.f32.mrf.mxu0
    %v136 = vadd.f32 0.0, %v135
    %137 = vmatmul.f32.gmra.mxu0 %v59
    %v138 = vpop.f32.mrf.mxu0
    %v139 = vadd.f32 0.0, %v138
    %140 = vdwg.mxu0
    %141 = vst [vmem:[#allocation7] sm:$0xff] %v94
    %142 = vst [vmem:[#allocation7 + $0x8] sm:$0xff] %v97
    %143 = vst [vmem:[#allocation7 + $0x10] sm:$0xff] %v100
    %144 = vst [vmem:[#allocation7 + $0x18] sm:$0xff] %v103
    %145 = vst [vmem:[#allocation7 + $0x20] sm:$0xff] %v106
    %146 = vst [vmem:[#allocation7 + $0x28] sm:$0xff] %v109
    %147 = vst [vmem:[#allocation7 + $0x30] sm:$0xff] %v112
    %148 = vst [vmem:[#allocation7 + $0x38] sm:$0xff] %v115
    %149 = vst [vmem:[#allocation7 + $0x40] sm:$0xff] %v118
    %150 = vst [vmem:[#allocation7 + $0x48] sm:$0xff] %v121
    %151 = vst [vmem:[#allocation7 + $0x50] sm:$0xff] %v124
    %152 = vst [vmem:[#allocation7 + $0x58] sm:$0xff] %v127
    %153 = vst [vmem:[#allocation7 + $0x60] sm:$0xff] %v130
    %154 = vst [vmem:[#allocation7 + $0x68] sm:$0xff] %v133
    %155 = vst [vmem:[#allocation7 + $0x70] sm:$0xff] %v136
    %156 = vst [vmem:[#allocation7 + $0x78] sm:$0xff] %v139
    // Predicated region
    $region18: #{tpu_custom_call.1} parent=1 // pred_check
      _
    $region19: #{tpu_custom_call.1} parent=1 // pred_check_branch
      %158 = sbr.rel (0) target = $region21
    $region20: #{tpu_custom_call.1} parent=1 // pred_region
      %160 = vsyncadd [#allocation4], 0
      %s161 = sshll.u32 [#allocation7], 4
      %s162 = int_to_ptr.vmem [resolvable:$true] %s161
      %s163 = sshll.u32 %s2, 4
      %s164 = int_to_ptr.hbm [resolvable:$true] %s163
      %169 = dma.vmem_to_hbm [thread:$0]  %s162, 2048, %s164, [#allocation4], 128, 128, 8
    $region21: #{tpu_custom_call.1} parent=1 // pred_fallthru
      _
    // Predicated region
    $region22: #{tpu_custom_call.1} parent=1 // pred_check
      _
    $region23: #{tpu_custom_call.1} parent=1 // pred_check_branch
      %171 = sbr.rel (0) target = $region25
    $region24: #{tpu_custom_call.1} parent=1 // pred_region
      %173 = dma.done [#allocation4], 2048
    $region25: #{tpu_custom_call.1} parent=1 // pred_fallthru
      _
    %174 = vsyncpa [#allocation3], 1
    %175 = vsyncpa [#allocation6], 1
    %176 = vsyncpa [#allocation4], 1

</llo_original>
